<compile_context>
chip_gen: v6e
topology: v6e:2x2x1
jax: 0.10.0
libtpu: 0.0.40
codegen_flags: <defaults>
</compile_context>

<pallas_src>
import functools

import jax
import jax.numpy as jnp
from jax.experimental import pallas as pl
from jax.experimental.pallas import tpu as pltpu


def _round_up(n, m):
    return ((n + m - 1) // m) * m


def _cdiv(a, b):
    return -(-a // b)


def _mlp_kernel(x_ref, w1_ref, b1_ref, w2_ref, b2_ref, w3_ref, b3_ref, o_ref):
    # Cast the activation tile to the weight dtype in-kernel (no-op for f32,
    # bf16 MXU path otherwise).  All accumulation is f32; bias/ReLU in f32.
    x = x_ref[...].astype(w1_ref.dtype)
    # Layer 1: Linear + ReLU
    h1 = jnp.dot(x, w1_ref[...], preferred_element_type=jnp.float32)
    h1 = jnp.maximum(h1 + b1_ref[...], 0.0)
    # Layer 2: Linear + ReLU
    h2 = jnp.dot(h1.astype(w2_ref.dtype), w2_ref[...],
                 preferred_element_type=jnp.float32)
    h2 = jnp.maximum(h2 + b2_ref[...], 0.0)
    # Layer 3: Linear (no activation)
    out = jnp.dot(h2.astype(w3_ref.dtype), w3_ref[...],
                  preferred_element_type=jnp.float32)
    o_ref[...] = (out + b3_ref[...]).astype(o_ref.dtype)


def prepare_params(w1, b1, w2, b2, w3, b3, *, compute_dtype=jnp.bfloat16):
    """One-time parameter prep (mirror of the module's __init__):
    - weights stored [in, out] (so x @ W + b == PyTorch's Linear) and cast to
      `compute_dtype` (bf16 by default; pass jnp.float32 for the exact path),
    - biases reshaped to (1, N) and kept in f32 for the VPU add.
    Do this ONCE, not per forward call."""
    cast_w = lambda w: jnp.asarray(w, dtype=compute_dtype)
    cast_b = lambda b: jnp.asarray(b, dtype=jnp.float32).reshape(1, -1)
    return (cast_w(w1), cast_b(b1), cast_w(w2), cast_b(b2), cast_w(w3), cast_b(b3))


@functools.partial(jax.jit,
                   static_argnames=("tm", "min_steps", "xla_fallback_batch"))
def neural_core_forward(x, w1, b1, w2, b2, w3, b3, *, tm=512, min_steps=1,
                        xla_fallback_batch=0):
    """Forward pass of NeuralCore.

    x : [B, input_size] float32
    w1: [input_size, hidden]  (f32 or bf16), b1: [1, hidden] f32
    w2: [hidden, hidden],                    b2: [1, hidden] f32
    w3: [hidden, output],                    b3: [1, output] f32
    Returns [B, output_size] float32.

    On v7x pass min_steps=2 so the "parallel" batch axis gives both
    TensorCores work; on single-TC v5e/v6e the default (one big tile for
    B <= tm) is best.
    """
    B, in_dim = x.shape
    hid = w1.shape[1]
    out_dim = w3.shape[1]

    if B <= xla_fallback_batch:
        # Tiny-batch fallback: MXU fill/drain + pallas_call overhead dominate;
        # let XLA fuse the three GEMMs instead.
        h = jnp.maximum(jnp.dot(x.astype(w1.dtype), w1,
                                preferred_element_type=jnp.float32) + b1, 0.0)
        h = jnp.maximum(jnp.dot(h.astype(w2.dtype), w2,
                                preferred_element_type=jnp.float32) + b2, 0.0)
        return jnp.dot(h.astype(w3.dtype), w3,
                       preferred_element_type=jnp.float32) + b3

    # --- Batch tiling: minimize padding waste, allow a partial edge block. ---
    n_steps = max(_cdiv(B, tm), min_steps)
    if n_steps <= 1:
        tm_eff = B          # single block == full array dim (always legal)
        n_steps = 1
    else:
        tm_eff = _round_up(_cdiv(B, n_steps), 8)   # sublane-aligned tile
        n_steps = _cdiv(B, tm_eff)
        if n_steps <= 1:
            tm_eff = B
            n_steps = 1

    # Weights/biases: constant index_map -> resident in VMEM across grid steps.
    resident = lambda shape: pl.BlockSpec(shape, lambda i: (0, 0))

    out = pl.pallas_call(
        _mlp_kernel,
        out_shape=jax.ShapeDtypeStruct((B, out_dim), jnp.float32),
        grid=(n_steps,),
        in_specs=[
            pl.BlockSpec((tm_eff, in_dim), lambda i: (i, 0)),   # x tile
            resident((in_dim, hid)), resident((1, hid)),        # w1, b1
            resident((hid, hid)),    resident((1, hid)),        # w2, b2
            resident((hid, out_dim)), resident((1, out_dim)),   # w3, b3
        ],
        out_specs=pl.BlockSpec((tm_eff, out_dim), lambda i: (i, 0)),
        compiler_params=pltpu.CompilerParams(
            dimension_semantics=("parallel",)),
    )(x, w1, b1, w2, b2, w3, b3)
    return out


def init_params(key, input_size=100, hidden_size=128, output_size=100):
    """Deterministic uniform(-0.1, 0.1) init, mirroring _initialize_weights()."""
    ks = jax.random.split(key, 6)
    u = lambda k, shape: jax.random.uniform(
        k, shape, dtype=jnp.float32, minval=-0.1, maxval=0.1)
    w1 = u(ks[0], (input_size, hidden_size))
    b1 = u(ks[1], (1, hidden_size))
    w2 = u(ks[2], (hidden_size, hidden_size))
    b2 = u(ks[3], (hidden_size,))               # 1-D on purpose: prepare_params reshapes
    w3 = u(ks[4], (hidden_size, output_size))
    b3 = u(ks[5], (1, output_size))
    return w1, b1, w2, b2, w3, b3


def _reference(x, w1, b1, w2, b2, w3, b3):
    b1 = jnp.reshape(b1, (1, -1)); b2 = jnp.reshape(b2, (1, -1))
    b3 = jnp.reshape(b3, (1, -1))
    h = jnp.maximum(x @ w1 + b1, 0.0)
    h = jnp.maximum(h @ w2 + b2, 0.0)
    return h @ w3 + b3


if __name__ == "__main__":
    input_size, hidden_size, output_size = 100, 128, 100

    key = jax.random.PRNGKey(0)
    pkey, xk1, xk2, xk3 = jax.random.split(key, 4)
    raw_params = init_params(pkey, input_size, hidden_size, output_size)

    # --- Exact f32 path, small batch (typical module usage). ---
    params_f32 = prepare_params(*raw_params, compute_dtype=jnp.float32)
    x_small = jax.random.normal(xk1, (8, input_size), dtype=jnp.float32)
    out_small = jax.block_until_ready(neural_core_forward(x_small, *params_f32))
    ref_small = _reference(x_small, *raw_params)
    assert out_small.shape == (8, output_size)
    assert jnp.allclose(out_small, ref_small, atol=1e-5, rtol=1e-5)

    # --- Multi-step grid with a partial edge tile (B not a tile multiple). ---
    x_mid = jax.random.normal(xk2, (200, input_size), dtype=jnp.float32)
    out_mid = jax.block_until_ready(
        neural_core_forward(x_mid, *params_f32, tm=64))
    ref_mid = _reference(x_mid, *raw_params)
    assert out_mid.shape == (200, output_size)
    assert jnp.allclose(out_mid, ref_mid, atol=1e-4, rtol=1e-4)

    # --- Default bf16-weight path (f32 accumulation), larger batch. ---
    params_bf16 = prepare_params(*raw_params)          # bf16 weights by default
    x_big = jax.random.normal(xk3, (512, input_size), dtype=jnp.float32)
    out_big = jax.block_until_ready(
        neural_core_forward(x_big, *params_bf16, tm=512, min_steps=2))
    ref_big = _reference(x_big, *raw_params)
    assert out_big.shape == (512, output_size)
    assert jnp.allclose(out_big, ref_big, atol=2e-2, rtol=2e-2)

    # TODO(synk): learn()/evolve_architecture()/save_brain()/load_brain() are
    # training / host-side utilities (Adam step, dynamic layer resizing, file
    # IO) and are not part of the forward pass translated here.

    print("KERNEL_OK")
</pallas_src>

<mosaic_0001>
module attributes {stable_mosaic.version = 11 : i64} {
  func.func @_mlp_kernel(%arg0: i32, %arg1: memref<8x100xf32, #tpu.memory_space<vmem>>, %arg2: memref<100x128xf32, #tpu.memory_space<vmem>>, %arg3: memref<1x128xf32, #tpu.memory_space<vmem>>, %arg4: memref<128x128xf32, #tpu.memory_space<vmem>>, %arg5: memref<1x128xf32, #tpu.memory_space<vmem>>, %arg6: memref<128x100xf32, #tpu.memory_space<vmem>>, %arg7: memref<1x100xf32, #tpu.memory_space<vmem>>, %arg8: memref<8x100xf32, #tpu.memory_space<vmem>>) attributes {dimension_semantics = [#tpu.dimension_semantics<parallel>], iteration_bounds = array<i64: 1>, scalar_prefetch = 0 : i64, scratch_operands = 0 : i64, tpu.core_type = #tpu.core_type<tc>, window_params = [{transform_indices = @transform_0, window_bounds = array<i64: 8, 100>}, {pipeline_mode = #tpu.pipeline_mode<synchronous>, transform_indices = @transform_1, window_bounds = array<i64: 100, 128>}, {pipeline_mode = #tpu.pipeline_mode<synchronous>, transform_indices = @transform_2, window_bounds = array<i64: 1, 128>}, {pipeline_mode = #tpu.pipeline_mode<synchronous>, transform_indices = @transform_3, window_bounds = array<i64: 128, 128>}, {pipeline_mode = #tpu.pipeline_mode<synchronous>, transform_indices = @transform_4, window_bounds = array<i64: 1, 128>}, {pipeline_mode = #tpu.pipeline_mode<synchronous>, transform_indices = @transform_5, window_bounds = array<i64: 128, 100>}, {pipeline_mode = #tpu.pipeline_mode<synchronous>, transform_indices = @transform_6, window_bounds = array<i64: 1, 100>}, {transform_indices = @transform_7, window_bounds = array<i64: 8, 100>}]} {
    %c0 = arith.constant 0 : index
    %c0_0 = arith.constant 0 : index
    %0 = vector.load %arg1[%c0, %c0_0] : memref<8x100xf32, #tpu.memory_space<vmem>>, vector<8x100xf32>
    %c0_1 = arith.constant 0 : index
    %c0_2 = arith.constant 0 : index
    %1 = vector.load %arg2[%c0_1, %c0_2] : memref<100x128xf32, #tpu.memory_space<vmem>>, vector<100x128xf32>
    %cst = arith.constant dense<0.000000e+00> : vector<8x128xf32>
    %2 = tpu.matmul %0, %1, %cst {dimension_numbers = #tpu.dot_dimension_numbers<[1], [0], [0], [1], [0, 0, 1, 1], [], []>} : vector<8x100xf32>, vector<100x128xf32>, vector<8x128xf32> -> vector<8x128xf32>
    %c0_3 = arith.constant 0 : index
    %c0_4 = arith.constant 0 : index
    %3 = vector.load %arg3[%c0_3, %c0_4] : memref<1x128xf32, #tpu.memory_space<vmem>>, vector<1x128xf32>
    %4 = vector.broadcast %3 : vector<1x128xf32> to vector<8x128xf32>
    %5 = arith.addf %2, %4 : vector<8x128xf32>
    %cst_5 = arith.constant 0.000000e+00 : f32
    %6 = vector.broadcast %cst_5 : f32 to vector<8x128xf32>
    %7 = arith.maximumf %5, %6 : vector<8x128xf32>
    %c0_6 = arith.constant 0 : index
    %c0_7 = arith.constant 0 : index
    %8 = vector.load %arg4[%c0_6, %c0_7] : memref<128x128xf32, #tpu.memory_space<vmem>>, vector<128x128xf32>
    %cst_8 = arith.constant dense<0.000000e+00> : vector<8x128xf32>
    %9 = tpu.matmul %7, %8, %cst_8 {dimension_numbers = #tpu.dot_dimension_numbers<[1], [0], [0], [1], [0, 0, 1, 1], [], []>} : vector<8x128xf32>, vector<128x128xf32>, vector<8x128xf32> -> vector<8x128xf32>
    %c0_9 = arith.constant 0 : index
    %c0_10 = arith.constant 0 : index
    %10 = vector.load %arg5[%c0_9, %c0_10] : memref<1x128xf32, #tpu.memory_space<vmem>>, vector<1x128xf32>
    %11 = vector.broadcast %10 : vector<1x128xf32> to vector<8x128xf32>
    %12 = arith.addf %9, %11 : vector<8x128xf32>
    %cst_11 = arith.constant 0.000000e+00 : f32
    %13 = vector.broadcast %cst_11 : f32 to vector<8x128xf32>
    %14 = arith.maximumf %12, %13 : vector<8x128xf32>
    %c0_12 = arith.constant 0 : index
    %c0_13 = arith.constant 0 : index
    %15 = vector.load %arg6[%c0_12, %c0_13] : memref<128x100xf32, #tpu.memory_space<vmem>>, vector<128x100xf32>
    %cst_14 = arith.constant dense<0.000000e+00> : vector<8x100xf32>
    %16 = tpu.matmul %14, %15, %cst_14 {dimension_numbers = #tpu.dot_dimension_numbers<[1], [0], [0], [1], [0, 0, 1, 1], [], []>} : vector<8x128xf32>, vector<128x100xf32>, vector<8x100xf32> -> vector<8x100xf32>
    %c0_15 = arith.constant 0 : index
    %c0_16 = arith.constant 0 : index
    %17 = vector.load %arg7[%c0_15, %c0_16] : memref<1x100xf32, #tpu.memory_space<vmem>>, vector<1x100xf32>
    %18 = vector.broadcast %17 : vector<1x100xf32> to vector<8x100xf32>
    %19 = arith.addf %16, %18 : vector<8x100xf32>
    %c0_17 = arith.constant 0 : index
    %c0_18 = arith.constant 0 : index
    %20 = vector.load %arg8[%c0_17, %c0_18] : memref<8x100xf32, #tpu.memory_space<vmem>>, vector<8x100xf32>
    tpu.vector_store %arg8[%c0_17, %c0_18], %19 {strides = array<i32>} : memref<8x100xf32, #tpu.memory_space<vmem>>, vector<8x100xf32>,
    return
  }
  func.func @transform_0(%arg0: i32) -> (i32, i32) {
    %c0_i32 = arith.constant 0 : i32
    %c0_i32_0 = arith.constant 0 : i32
    return %arg0, %c0_i32 : i32, i32
  }
  func.func @transform_1(%arg0: i32) -> (i32, i32) {
    %c0_i32 = arith.constant 0 : i32
    %c0_i32_0 = arith.constant 0 : i32
    %c0_i32_1 = arith.constant 0 : i32
    return %c0_i32, %c0_i32_0 : i32, i32
  }
  func.func @transform_2(%arg0: i32) -> (i32, i32) {
    %c0_i32 = arith.constant 0 : i32
    %c0_i32_0 = arith.constant 0 : i32
    %c0_i32_1 = arith.constant 0 : i32
    return %c0_i32, %c0_i32_0 : i32, i32
  }
  func.func @transform_3(%arg0: i32) -> (i32, i32) {
    %c0_i32 = arith.constant 0 : i32
    %c0_i32_0 = arith.constant 0 : i32
    %c0_i32_1 = arith.constant 0 : i32
    return %c0_i32, %c0_i32_0 : i32, i32
  }
  func.func @transform_4(%arg0: i32) -> (i32, i32) {
    %c0_i32 = arith.constant 0 : i32
    %c0_i32_0 = arith.constant 0 : i32
    %c0_i32_1 = arith.constant 0 : i32
    return %c0_i32, %c0_i32_0 : i32, i32
  }
  func.func @transform_5(%arg0: i32) -> (i32, i32) {
    %c0_i32 = arith.constant 0 : i32
    %c0_i32_0 = arith.constant 0 : i32
    %c0_i32_1 = arith.constant 0 : i32
    return %c0_i32, %c0_i32_0 : i32, i32
  }
  func.func @transform_6(%arg0: i32) -> (i32, i32) {
    %c0_i32 = arith.constant 0 : i32
    %c0_i32_0 = arith.constant 0 : i32
    %c0_i32_1 = arith.constant 0 : i32
    return %c0_i32, %c0_i32_0 : i32, i32
  }
  func.func @transform_7(%arg0: i32) -> (i32, i32) {
    %c0_i32 = arith.constant 0 : i32
    %c0_i32_0 = arith.constant 0 : i32
    return %arg0, %c0_i32 : i32, i32
  }
}

</mosaic_0001>

<llo_original>
// kernel: neural_core_forward.1
$region0: #{neural_core_forward.1}
  #allocation0 [shape = 'u32[]', space=smem, size = 0x4, offset = 0x4, fixed_abs, tag = 'smem constant byte address 0x4 - core index']
  #allocation1 [shape = 'u32[144,128]{1,0:T(1,128)}', space=vmem, size = 0x12000, scoped, tag = 'internal scratch']
  %s0 = inlined_call_operand.hbm [shape: f32[8,100], index: 0, kind: input, shape index: {}]
  %s1 = inlined_call_operand.vmem [shape: f32[100,128], index: 1, kind: input, shape index: {}]
  %s2 = inlined_call_operand.vmem [shape: f32[1,128], index: 2, kind: input, shape index: {}]
  %s3 = inlined_call_operand.vmem [shape: f32[128,128], index: 3, kind: input, shape index: {}]
  %s4 = inlined_call_operand.vmem [shape: f32[1,128], index: 4, kind: input, shape index: {}]
  %s5 = inlined_call_operand.vmem [shape: f32[128,100], index: 5, kind: input, shape index: {}]
  %s6 = inlined_call_operand.vmem [shape: f32[1,100], index: 6, kind: input, shape index: {}]
  %s7 = inlined_call_operand.hbm [shape: f32[8,100], index: 7, kind: output, shape index: {}]
  %s8 = sld [smem:[#allocation0]]
  $region42: #{neural_core_forward.1} parent=0
    _
  %s10 = ssub.s32 1, %s8
  %s11 = scalar_select 0, %s10, %s8
  $region1: #{neural_core_forward.1} parent=0
    #allocation2 [shape = 'u8[4096]{0}', space=vmem, size = 0x1000, scoped, tag = 'input window, operand 0, single buffered']
    #allocation3 [shape = 's32[1]{0}', space=sflag, size = 0x4, scoped, tag = 'scoped memory for neural_core_forward.1']
    #allocation4 [shape = 's32[1]{0}', space=sflag, size = 0x4, scoped, tag = 'scoped memory for neural_core_forward.1']
    #allocation5 [shape = 'u8[4096]{0}', space=vmem, size = 0x1000, scoped, tag = 'output window, operand 0, single buffered']
    %12 = vsyncpa [#allocation3], 0
    %13 = vsyncpa [#allocation4], 0
    // Predicated region
    $region2: #{neural_core_forward.1} parent=1 // pred_check
      _
    $region3: #{neural_core_forward.1} parent=1 // pred_check_branch
      %15 = sbr.rel (0) target = $region5
    $region4: #{neural_core_forward.1} parent=1 // pred_region
      %s17 = ssub.s32 128, 128
      %18 = vsyncadd [#allocation3], %s17
      %s20 = sshll.u32 [#allocation2], 4
      %s21 = int_to_ptr.vmem [resolvable:$true] %s20
      %23 = dma.hbm_to_vmem [thread:$0]  %s0, 128, %s21, [#allocation3]
    $region5: #{neural_core_forward.1} parent=1 // pred_fallthru
      _
    // Predicated region
    $region6: #{neural_core_forward.1} parent=1 // pred_check
      _
    $region7: #{neural_core_forward.1} parent=1 // pred_check_branch
      %25 = sbr.rel (0) target = $region9
    $region8: #{neural_core_forward.1} parent=1 // pred_region
      _
    $region9: #{neural_core_forward.1} parent=1 // pred_fallthru
      _
    // Predicated region
    $region10: #{neural_core_forward.1} parent=1 // pred_check
      _
    $region11: #{neural_core_forward.1} parent=1 // pred_check_branch
      %27 = sbr.rel (0) target = $region13
    $region12: #{neural_core_forward.1} parent=1 // pred_region
      _
    $region13: #{neural_core_forward.1} parent=1 // pred_fallthru
      _
    // Predicated region
    $region14: #{neural_core_forward.1} parent=1 // pred_check
      _
    $region15: #{neural_core_forward.1} parent=1 // pred_check_branch
      %29 = sbr.rel (0) target = $region17
    $region16: #{neural_core_forward.1} parent=1 // pred_region
      _
    $region17: #{neural_core_forward.1} parent=1 // pred_fallthru
      _
    // Predicated region
    $region18: #{neural_core_forward.1} parent=1 // pred_check
      _
    $region19: #{neural_core_forward.1} parent=1 // pred_check_branch
      %31 = sbr.rel (0) target = $region21
    $region20: #{neural_core_forward.1} parent=1 // pred_region
      _
    $region21: #{neural_core_forward.1} parent=1 // pred_fallthru
      _
    // Predicated region
    $region22: #{neural_core_forward.1} parent=1 // pred_check
      _
    $region23: #{neural_core_forward.1} parent=1 // pred_check_branch
      %33 = sbr.rel (0) target = $region25
    $region24: #{neural_core_forward.1} parent=1 // pred_region
      _
    $region25: #{neural_core_forward.1} parent=1 // pred_fallthru
      _
    // Predicated region
    $region26: #{neural_core_forward.1} parent=1 // pred_check
      _
    $region27: #{neural_core_forward.1} parent=1 // pred_check_branch
      %35 = sbr.rel (0) target = $region29
    $region28: #{neural_core_forward.1} parent=1 // pred_region
      _
    $region29: #{neural_core_forward.1} parent=1 // pred_fallthru
      _
    // Predicated region
    $region30: #{neural_core_forward.1} parent=1 // pred_check
      _
    $region31: #{neural_core_forward.1} parent=1 // pred_check_branch
      %37 = sbr.rel (0) target = $region33
    $region32: #{neural_core_forward.1} parent=1 // pred_region
      %38 = dma.done [#allocation3], 128
    $region33: #{neural_core_forward.1} parent=1 // pred_fallthru
      _
    %v39 = vld [vmem:[#allocation2] sm:$0xff]
    %v40 = vld [vmem:[%s1] sm:$0xff]
    %v41 = vld [vmem:[%s1 + $0x8] sm:$0xff]
    %v42 = vld [vmem:[%s1 + $0x10] sm:$0xff]
    %v43 = vld [vmem:[%s1 + $0x18] sm:$0xff]
    %v44 = vld [vmem:[%s1 + $0x20] sm:$0xff]
    %v45 = vld [vmem:[%s1 + $0x28] sm:$0xff]
    %v46 = vld [vmem:[%s1 + $0x30] sm:$0xff]
    %v47 = vld [vmem:[%s1 + $0x38] sm:$0xff]
    %v48 = vld [vmem:[%s1 + $0x40] sm:$0xff]
    %v49 = vld [vmem:[%s1 + $0x48] sm:$0xff]
    %v50 = vld [vmem:[%s1 + $0x50] sm:$0xff]
    %v51 = vld [vmem:[%s1 + $0x58] sm:$0xff]
    %v52 = vld [vmem:[%s1 + $0x60] sm:$0xf]
    %v53 = vld [vmem:[%s2] sm:$0x1]
    %v55 = vlaneseq
    %v56 = vshrl.u32 %v55, 7
    %v57 = vsub.s32 0, %v56
    %v58 = vrot.slane %v53, %v57
    %vm60 = vcmask 818176
    %v62 = vsel %vm60, %v39, 0
    %vm64 = vcmask 1043456
    %v66 = vsel %vm64, %v52, 0
    %68 = vmatprep.subr.mxu0 0.0
    %69 = vmatpush1.msra.mxu0 0.0
    %70 = vmatprep.subr.mxu0 0.0
    %71 = vmatpush1.msra.mxu0 0.0
    %72 = vmatprep.subr.mxu0 0.0
    %73 = vmatpush1.msra.mxu0 0.0
    %74 = vmatprep.subr.mxu0 0.0
    %75 = vmatpush1.msra.mxu0 %v66
    %76 = vmatprep.subr.mxu0 0.0
    %77 = vmatpush1.msra.mxu0 %v51
    %78 = vmatprep.subr.mxu0 0.0
    %79 = vmatpush1.msra.mxu0 %v50
    %80 = vmatprep.subr.mxu0 0.0
    %81 = vmatpush1.msra.mxu0 %v49
    %82 = vmatprep.subr.mxu0 0.0
    %83 = vmatpush1.msra.mxu0 %v48
    %84 = vmatprep.subr.mxu0 0.0
    %85 = vmatpush1.msra.mxu0 %v47
    %86 = vmatprep.subr.mxu0 0.0
    %87 = vmatpush1.msra.mxu0 %v46
    %88 = vmatprep.subr.mxu0 0.0
    %89 = vmatpush1.msra.mxu0 %v45
    %90 = vmatprep.subr.mxu0 0.0
    %91 = vmatpush1.msra.mxu0 %v44
    %92 = vmatprep.subr.mxu0 0.0
    %93 = vmatpush1.msra.mxu0 %v43
    %94 = vmatprep.subr.mxu0 0.0
    %95 = vmatpush1.msra.mxu0 %v42
    %96 = vmatprep.subr.mxu0 0.0
    %97 = vmatpush1.msra.mxu0 %v41
    %98 = vmatprep.subr.mxu0 0.0
    %99 = vmatpush1.msra.mxu0 %v40
    %100 = vmatprep.subr.mxu0 0.0
    %101 = vmatpush2.msra.mxu0 0.0
    %102 = vmatprep.subr.mxu0 0.0
    %103 = vmatpush2.msra.mxu0 0.0
    %104 = vmatprep.subr.mxu0 0.0
    %105 = vmatpush2.msra.mxu0 0.0
    %106 = vmatprep.subr.mxu0 0.0
    %107 = vmatpush2.msra.mxu0 0.0
    %108 = vmatprep.subr.mxu0 0.0
    %109 = vmatpush2.msra.mxu0 0.0
    %110 = vmatprep.subr.mxu0 0.0
    %111 = vmatpush2.msra.mxu0 0.0
    %112 = vmatprep.subr.mxu0 0.0
    %113 = vmatpush2.msra.mxu0 0.0
    %114 = vmatprep.subr.mxu0 0.0
    %115 = vmatpush2.msra.mxu0 0.0
    %116 = vmatprep.subr.mxu0 0.0
    %117 = vmatpush2.msra.mxu0 0.0
    %118 = vmatprep.subr.mxu0 0.0
    %119 = vmatpush2.msra.mxu0 0.0
    %120 = vmatprep.subr.mxu0 0.0
    %121 = vmatpush2.msra.mxu0 0.0
    %122 = vmatprep.subr.mxu0 0.0
    %123 = vmatpush2.msra.mxu0 0.0
    %124 = vmatprep.subr.mxu0 0.0
    %125 = vmatpush2.msra.mxu0 0.0
    %126 = vmatprep.subr.mxu0 0.0
    %127 = vmatpush2.msra.mxu0 0.0
    %128 = vmatprep.subr.mxu0 0.0
    %129 = vmatpush2.msra.mxu0 0.0
    %130 = vmatprep.subr.mxu0 0.0
    %131 = vmatpush2.msra.mxu0 0.0
    %132 = vmatprep.mubr.f32.mxu0 0.0
    %133 = vmatmul.mubr.f32.gmra.mxu0 %v62
    %v134 = vpop.f32.mrf.mxu0
    %v135 = vadd.f32 %v58, %v134
    %v136 = vpop.f32.mrf.mxu0
    %137 = vdwg.mxu0
    %v138 = vmax.f32 %v135, 0.0
    %v139 = vld [vmem:[%s3] sm:$0xff]
    %v140 = vld [vmem:[%s3 + $0x8] sm:$0xff]
    %v141 = vld [vmem:[%s3 + $0x10] sm:$0xff]
    %v142 = vld [vmem:[%s3 + $0x18] sm:$0xff]
    %v143 = vld [vmem:[%s3 + $0x20] sm:$0xff]
    %v144 = vld [vmem:[%s3 + $0x28] sm:$0xff]
    %v145 = vld [vmem:[%s3 + $0x30] sm:$0xff]
    %v146 = vld [vmem:[%s3 + $0x38] sm:$0xff]
    %v147 = vld [vmem:[%s3 + $0x40] sm:$0xff]
    %v148 = vld [vmem:[%s3 + $0x48] sm:$0xff]
    %v149 = vld [vmem:[%s3 + $0x50] sm:$0xff]
    %v150 = vld [vmem:[%s3 + $0x58] sm:$0xff]
    %v151 = vld [vmem:[%s3 + $0x60] sm:$0xff]
    %v152 = vld [vmem:[%s3 + $0x68] sm:$0xff]
    %v153 = vld [vmem:[%s3 + $0x70] sm:$0xff]
    %v154 = vld [vmem:[%s3 + $0x78] sm:$0xff]
    %v155 = vld [vmem:[%s4] sm:$0x1]
    %v157 = vlaneseq
    %v158 = vshrl.u32 %v157, 7
    %v159 = vsub.s32 0, %v158
    %v160 = vrot.slane %v155, %v159
    %162 = vmatprep.subr.mxu0 0.0
    %163 = vmatpush1.msra.mxu0 %v154
    %164 = vmatprep.subr.mxu0 0.0
    %165 = vmatpush1.msra.mxu0 %v153
    %166 = vmatprep.subr.mxu0 0.0
    %167 = vmatpush1.msra.mxu0 %v152
    %168 = vmatprep.subr.mxu0 0.0
    %169 = vmatpush1.msra.mxu0 %v151
    %170 = vmatprep.subr.mxu0 0.0
    %171 = vmatpush1.msra.mxu0 %v150
    %172 = vmatprep.subr.mxu0 0.0
    %173 = vmatpush1.msra.mxu0 %v149
    %174 = vmatprep.subr.mxu0 0.0
    %175 = vmatpush1.msra.mxu0 %v148
    %176 = vmatprep.subr.mxu0 0.0
    %177 = vmatpush1.msra.mxu0 %v147
    %178 = vmatprep.subr.mxu0 0.0
    %179 = vmatpush1.msra.mxu0 %v146
    %180 = vmatprep.subr.mxu0 0.0
    %181 = vmatpush1.msra.mxu0 %v145
    %182 = vmatprep.subr.mxu0 0.0
    %183 = vmatpush1.msra.mxu0 %v144
    %184 = vmatprep.subr.mxu0 0.0
    %185 = vmatpush1.msra.mxu0 %v143
    %186 = vmatprep.subr.mxu0 0.0
    %187 = vmatpush1.msra.mxu0 %v142
    %188 = vmatprep.subr.mxu0 0.0
    %189 = vmatpush1.msra.mxu0 %v141
    %190 = vmatprep.subr.mxu0 0.0
    %191 = vmatpush1.msra.mxu0 %v140
    %192 = vmatprep.subr.mxu0 0.0
    %193 = vmatpush1.msra.mxu0 %v139
    %194 = vmatprep.subr.mxu0 0.0
    %195 = vmatpush2.msra.mxu0 0.0
    %196 = vmatprep.subr.mxu0 0.0
    %197 = vmatpush2.msra.mxu0 0.0
    %198 = vmatprep.subr.mxu0 0.0
    %199 = vmatpush2.msra.mxu0 0.0
    %200 = vmatprep.subr.mxu0 0.0
    %201 = vmatpush2.msra.mxu0 0.0
    %202 = vmatprep.subr.mxu0 0.0
    %203 = vmatpush2.msra.mxu0 0.0
    %204 = vmatprep.subr.mxu0 0.0
    %205 = vmatpush2.msra.mxu0 0.0
    %206 = vmatprep.subr.mxu0 0.0
    %207 = vmatpush2.msra.mxu0 0.0
    %208 = vmatprep.subr.mxu0 0.0
    %209 = vmatpush2.msra.mxu0 0.0
    %210 = vmatprep.subr.mxu0 0.0
    %211 = vmatpush2.msra.mxu0 0.0
    %212 = vmatprep.subr.mxu0 0.0
    %213 = vmatpush2.msra.mxu0 0.0
    %214 = vmatprep.subr.mxu0 0.0
    %215 = vmatpush2.msra.mxu0 0.0
    %216 = vmatprep.subr.mxu0 0.0
    %217 = vmatpush2.msra.mxu0 0.0
    %218 = vmatprep.subr.mxu0 0.0
    %219 = vmatpush2.msra.mxu0 0.0
    %220 = vmatprep.subr.mxu0 0.0
    %221 = vmatpush2.msra.mxu0 0.0
    %222 = vmatprep.subr.mxu0 0.0
    %223 = vmatpush2.msra.mxu0 0.0
    %224 = vmatprep.subr.mxu0 0.0
    %225 = vmatpush2.msra.mxu0 0.0
    %226 = vmatprep.mubr.f32.mxu0 0.0
    %227 = vmatmul.mubr.f32.gmra.mxu0 %v138
    %v228 = vpop.f32.mrf.mxu0
    %v229 = vadd.f32 %v160, %v228
    %v230 = vpop.f32.mrf.mxu0
    %231 = vdwg.mxu0
    %v232 = vmax.f32 %v229, 0.0
    %v233 = vld [vmem:[%s5] sm:$0xff]
    %v234 = vld [vmem:[%s5 + $0x8] sm:$0xff]
    %v235 = vld [vmem:[%s5 + $0x10] sm:$0xff]
    %v236 = vld [vmem:[%s5 + $0x18] sm:$0xff]
    %v237 = vld [vmem:[%s5 + $0x20] sm:$0xff]
    %v238 = vld [vmem:[%s5 + $0x28] sm:$0xff]
    %v239 = vld [vmem:[%s5 + $0x30] sm:$0xff]
    %v240 = vld [vmem:[%s5 + $0x38] sm:$0xff]
    %v241 = vld [vmem:[%s5 + $0x40] sm:$0xff]
    %v242 = vld [vmem:[%s5 + $0x48] sm:$0xff]
    %v243 = vld [vmem:[%s5 + $0x50] sm:$0xff]
    %v244 = vld [vmem:[%s5 + $0x58] sm:$0xff]
    %v245 = vld [vmem:[%s5 + $0x60] sm:$0xff]
    %v246 = vld [vmem:[%s5 + $0x68] sm:$0xff]
    %v247 = vld [vmem:[%s5 + $0x70] sm:$0xff]
    %v248 = vld [vmem:[%s5 + $0x78] sm:$0xff]
    %v249 = vld [vmem:[%s6] sm:$0x1]
    %v251 = vlaneseq
    %v252 = vshrl.u32 %v251, 7
    %v253 = vsub.s32 0, %v252
    %v254 = vrot.slane %v249, %v253
    %256 = vmatprep.subr.mxu0 0.0
    %257 = vmatpush1.msra.mxu0 %v248
    %258 = vmatprep.subr.mxu0 0.0
    %259 = vmatpush1.msra.mxu0 %v247
    %260 = vmatprep.subr.mxu0 0.0
    %261 = vmatpush1.msra.mxu0 %v246
    %262 = vmatprep.subr.mxu0 0.0
    %263 = vmatpush1.msra.mxu0 %v245
    %264 = vmatprep.subr.mxu0 0.0
    %265 = vmatpush1.msra.mxu0 %v244
    %266 = vmatprep.subr.mxu0 0.0
    %267 = vmatpush1.msra.mxu0 %v243
    %268 = vmatprep.subr.mxu0 0.0
    %269 = vmatpush1.msra.mxu0 %v242
    %270 = vmatprep.subr.mxu0 0.0
    %271 = vmatpush1.msra.mxu0 %v241
    %272 = vmatprep.subr.mxu0 0.0
    %273 = vmatpush1.msra.mxu0 %v240
    %274 = vmatprep.subr.mxu0 0.0
    %275 = vmatpush1.msra.mxu0 %v239
    %276 = vmatprep.subr.mxu0 0.0
    %277 = vmatpush1.msra.mxu0 %v238
    %278 = vmatprep.subr.mxu0 0.0
    %279 = vmatpush1.msra.mxu0 %v237
    %280 = vmatprep.subr.mxu0 0.0
    %281 = vmatpush1.msra.mxu0 %v236
    %282 = vmatprep.subr.mxu0 0.0
    %283 = vmatpush1.msra.mxu0 %v235
    %284 = vmatprep.subr.mxu0 0.0
    %285 = vmatpush1.msra.mxu0 %v234
    %286 = vmatprep.subr.mxu0 0.0
    %287 = vmatpush1.msra.mxu0 %v233
    %288 = vmatprep.subr.mxu0 0.0
    %289 = vmatpush2.msra.mxu0 0.0
    %290 = vmatprep.subr.mxu0 0.0
    %291 = vmatpush2.msra.mxu0 0.0
    %292 = vmatprep.subr.mxu0 0.0
    %293 = vmatpush2.msra.mxu0 0.0
    %294 = vmatprep.subr.mxu0 0.0
    %295 = vmatpush2.msra.mxu0 0.0
    %296 = vmatprep.subr.mxu0 0.0
    %297 = vmatpush2.msra.mxu0 0.0
    %298 = vmatprep.subr.mxu0 0.0
    %299 = vmatpush2.msra.mxu0 0.0
    %300 = vmatprep.subr.mxu0 0.0
    %301 = vmatpush2.msra.mxu0 0.0
    %302 = vmatprep.subr.mxu0 0.0
    %303 = vmatpush2.msra.mxu0 0.0
    %304 = vmatprep.subr.mxu0 0.0
    %305 = vmatpush2.msra.mxu0 0.0
    %306 = vmatprep.subr.mxu0 0.0
    %307 = vmatpush2.msra.mxu0 0.0
    %308 = vmatprep.subr.mxu0 0.0
    %309 = vmatpush2.msra.mxu0 0.0
    %310 = vmatprep.subr.mxu0 0.0
    %311 = vmatpush2.msra.mxu0 0.0
    %312 = vmatprep.subr.mxu0 0.0
    %313 = vmatpush2.msra.mxu0 0.0
    %314 = vmatprep.subr.mxu0 0.0
    %315 = vmatpush2.msra.mxu0 0.0
    %316 = vmatprep.subr.mxu0 0.0
    %317 = vmatpush2.msra.mxu0 0.0
    %318 = vmatprep.subr.mxu0 0.0
    %319 = vmatpush2.msra.mxu0 0.0
    %320 = vmatprep.mubr.f32.mxu0 0.0
    %321 = vmatmul.mubr.f32.gmra.mxu0 %v232
    %v322 = vpop.f32.mrf.mxu0
    %v323 = vadd.f32 %v254, %v322
    %v324 = vpop.f32.mrf.mxu0
    %325 = vdwg.mxu0
    %326 = vst.msk [vmem:[#allocation5] sm:$0xff] %vm60, %v323
    // Predicated region
    $region34: #{neural_core_forward.1} parent=1 // pred_check
      _
    $region35: #{neural_core_forward.1} parent=1 // pred_check_branch
      %328 = sbr.rel (0) target = $region37
    $region36: #{neural_core_forward.1} parent=1 // pred_region
      %s330 = ssub.s32 128, 128
      %331 = vsyncadd [#allocation4], %s330
      %s333 = sshll.u32 [#allocation5], 4
      %s334 = int_to_ptr.vmem [resolvable:$true] %s333
      %336 = dma.vmem_to_hbm [thread:$0]  %s334, 128, %s7, [#allocation4]
    $region37: #{neural_core_forward.1} parent=1 // pred_fallthru
      _
    // Predicated region
    $region38: #{neural_core_forward.1} parent=1 // pred_check
      _
    $region39: #{neural_core_forward.1} parent=1 // pred_check_branch
      %338 = sbr.rel (0) target = $region41
    $region40: #{neural_core_forward.1} parent=1 // pred_region
      %339 = dma.done [#allocation4], 128
    $region41: #{neural_core_forward.1} parent=1 // pred_fallthru
      _
    %340 = vsyncpa [#allocation3], 1
    %341 = vsyncpa [#allocation4], 1

</llo_original>
